<compile_context>
chip_gen: v6e
topology: v6e:2x2x1
jax: 0.10.0
libtpu: 0.0.40
codegen_flags: <defaults>
</compile_context>

<pallas_src>
import jax
import jax.numpy as jnp
from jax.experimental import pallas as pl
from jax.experimental.pallas import tpu as pltpu

N_FILTERS = 64    # encoder filters
KERNEL = 16       # analysis/synthesis window length
STRIDE = 8        # hop (50% overlap)
N_SRC = 2         # number of separated sources
MAX_TM = 512      # frames (rows) per grid step


# ---------------------------------------------------------------------------
# Fused Pallas kernel: encoder + masker + masking + decoder frame synthesis
# ---------------------------------------------------------------------------
def _fused_kernel(frames_ref, w_enc_ref, b_enc_ref, w_mask_ref, b_mask_ref,
                  w_dec_ref, *o_refs):
    fr = frames_ref[...]                                                  # (TM, K)

    # encoder: Conv1d(1, N, K, stride=S) + ReLU  -> tf_rep rows (TM, N)
    tf = jnp.dot(fr, w_enc_ref[...], preferred_element_type=jnp.float32) + b_enc_ref[...]
    tf = jnp.maximum(tf, 0.0)

    # masker: pointwise conv + sigmoid  -> est_masks (TM, N_SRC*N)
    logits = (jnp.dot(tf, w_mask_ref[...], preferred_element_type=jnp.float32)
              + b_mask_ref[...])
    masks = jax.nn.sigmoid(logits)

    # masking + decoder (ConvTranspose1d as per-frame matmul), one output per source
    wd = w_dec_ref[...]                                                   # (N, K)
    for s, o_ref in enumerate(o_refs):
        masked_s = masks[:, s * N_FILTERS:(s + 1) * N_FILTERS] * tf       # est_masks * tf_rep
        o_ref[...] = jnp.dot(masked_s, wd, preferred_element_type=jnp.float32)


def _round_up(a, m):
    return (a + m - 1) // m * m


def _fused_call(frames, params):
    """Run the fused kernel over row tiles of `frames` (R, K) -> N_SRC arrays (R, K)."""
    R, K = frames.shape
    tm = min(MAX_TM, _round_up(R, 8))          # big tile; shrink for tiny inputs
    rp = _round_up(R, tm)
    if rp != R:
        frames = jnp.pad(frames, ((0, rp - R), (0, 0)))

    consts = (params["w_enc"], params["b_enc"], params["w_mask"],
              params["b_mask"], params["w_dec"])
    in_specs = [pl.BlockSpec((tm, K), lambda i: (i, 0))]
    in_specs += [pl.BlockSpec(c.shape, lambda i: (0, 0)) for c in consts]  # resident weights

    outs = pl.pallas_call(
        _fused_kernel,
        grid=(rp // tm,),
        in_specs=in_specs,
        out_specs=[pl.BlockSpec((tm, KERNEL), lambda i: (i, 0)) for _ in range(N_SRC)],
        out_shape=tuple(jax.ShapeDtypeStruct((rp, KERNEL), jnp.float32)
                        for _ in range(N_SRC)),
        compiler_params=pltpu.CompilerParams(dimension_semantics=("parallel",)),
    )(frames, *consts)
    return [o[:R] for o in outs]


# ---------------------------------------------------------------------------
# Model forward (glue: framing, overlap-add, pad_x_to_y)
# ---------------------------------------------------------------------------
def model_forward(x, params):
    # x: (B, L)  (the 2-D branch of the PyTorch forward; unsqueeze(1) implicit in framing)
    B, L = x.shape
    T = (L - KERNEL) // STRIDE + 1
    # TODO(synk): framing kept as an XLA gather; in-kernel framing needs overlapping
    # (halo) input blocks per batch row, which a rectangular BlockSpec can't express.
    idx = jnp.arange(T)[:, None] * STRIDE + jnp.arange(KERNEL)[None, :]
    frames = x[:, idx].reshape(B * T, KERNEL)                              # (B*T, K)

    frame_outs = _fused_call(frames, params)                               # N_SRC x (B*T, K)

    L_dec = (T - 1) * STRIDE + KERNEL
    ys = []
    for fo in frame_outs:
        fo = fo.reshape(B, T, KERNEL)
        y = jnp.zeros((B, L_dec), jnp.float32)
        # overlap-add: KERNEL/STRIDE == 2 shifted contiguous-slab adds (plain JAX).
        for k0 in range(0, KERNEL, STRIDE):
            seg = fo[:, :, k0:k0 + STRIDE].reshape(B, T * STRIDE)
            y = y.at[:, k0:k0 + T * STRIDE].add(seg)
        ys.append(y)
    y = jnp.stack(ys, axis=1) + params["b_dec"]          # ConvTranspose1d bias (out_ch=1)

    # pad_x_to_y: pad (or trim) decoder output to the input length
    if L_dec < L:
        y = jnp.pad(y, ((0, 0), (0, 0), (0, L - L_dec)))
    else:
        y = y[..., :L]
    return y


# ---------------------------------------------------------------------------
# Pure-JAX reference (same math, different code path) for verification
# ---------------------------------------------------------------------------
def reference_forward(x, params):
    B, L = x.shape
    T = (L - KERNEL) // STRIDE + 1
    idx = jnp.arange(T)[:, None] * STRIDE + jnp.arange(KERNEL)[None, :]
    fr = x[:, idx]                                                         # (B, T, K)
    tf = jax.nn.relu(jnp.einsum('btk,kn->btn', fr, params["w_enc"]) + params["b_enc"][0])
    masks = jax.nn.sigmoid(jnp.einsum('btn,nm->btm', tf, params["w_mask"])
                           + params["b_mask"][0])
    masks = masks.reshape(B, T, N_SRC, N_FILTERS)
    masked = masks * tf[:, :, None, :]
    fo = jnp.einsum('btsn,nk->btsk', masked, params["w_dec"])              # (B, T, S, K)
    L_dec = (T - 1) * STRIDE + KERNEL
    y = jnp.zeros((B, N_SRC, L_dec), jnp.float32)
    for t in range(T):
        y = y.at[:, :, t * STRIDE:t * STRIDE + KERNEL].add(fo[:, t].transpose(0, 2, 1)
                                                           if False else fo[:, t])
    y = y + params["b_dec"]
    if L_dec < L:
        y = jnp.pad(y, ((0, 0), (0, 0), (0, L - L_dec)))
    else:
        y = y[..., :L]
    return y


def init_params(key):
    k1, k2, k3, k4, k5, k6 = jax.random.split(key, 6)
    s_enc = 1.0 / jnp.sqrt(KERNEL)
    s_msk = 1.0 / jnp.sqrt(N_FILTERS)
    return {
        # Conv1d(1, N, K): torch weight (N, 1, K) -> stored as (K, N) for matmul
        "w_enc": (jax.random.uniform(k1, (KERNEL, N_FILTERS), minval=-1, maxval=1) * s_enc
                  ).astype(jnp.float32),
        "b_enc": (jax.random.uniform(k2, (1, N_FILTERS), minval=-1, maxval=1) * s_enc
                  ).astype(jnp.float32),
        # Conv1d(N, N_SRC*N, 1): torch weight (N_SRC*N, N, 1) -> (N, N_SRC*N)
        "w_mask": (jax.random.uniform(k3, (N_FILTERS, N_SRC * N_FILTERS), minval=-1, maxval=1)
                   * s_msk).astype(jnp.float32),
        "b_mask": (jax.random.uniform(k4, (1, N_SRC * N_FILTERS), minval=-1, maxval=1)
                   * s_msk).astype(jnp.float32),
        # ConvTranspose1d(N, 1, K): torch weight (N, 1, K) -> (N, K)
        "w_dec": (jax.random.uniform(k5, (N_FILTERS, KERNEL), minval=-1, maxval=1) * s_msk
                  ).astype(jnp.float32),
        "b_dec": (jax.random.uniform(k6, (), minval=-1, maxval=1) * s_msk).astype(jnp.float32),
    }


if __name__ == "__main__":
    key = jax.random.PRNGKey(0)
    pkey, xkey1, xkey2 = jax.random.split(key, 3)
    params = init_params(pkey)

    fwd = jax.jit(model_forward)
    ref = jax.jit(reference_forward)

    # small shape: B=2, L=136 -> T=16 frames (single grid step)
    B1, L1 = 2, 136
    x1 = jax.random.normal(xkey1, (B1, L1), dtype=jnp.float32)
    o1 = jax.block_until_ready(fwd(x1, params))
    r1 = jax.block_until_ready(ref(x1, params))
    assert o1.shape == (B1, N_SRC, L1), o1.shape
    assert jnp.all(jnp.isfinite(o1))
    assert jnp.allclose(o1, r1, rtol=1e-4, atol=1e-4), float(jnp.max(jnp.abs(o1 - r1)))

    # slightly larger shape: exercises padding + multiple grid steps (tm=512, 2 tiles)
    B2, L2 = 2, 2064                  # T = 257 frames -> R = 514 rows
    x2 = jax.random.normal(xkey2, (B2, L2), dtype=jnp.float32)
    o2 = jax.block_until_ready(fwd(x2, params))
    r2 = jax.block_until_ready(ref(x2, params))
    assert o2.shape == (B2, N_SRC, L2), o2.shape
    assert jnp.all(jnp.isfinite(o2))
    assert jnp.allclose(o2, r2, rtol=1e-4, atol=1e-4), float(jnp.max(jnp.abs(o2 - r2)))

    print("KERNEL_OK")
</pallas_src>

<mosaic_0001>
module attributes {stable_mosaic.version = 11 : i64} {
  func.func @_fused_kernel(%arg0: i32, %arg1: memref<32x16xf32, #tpu.memory_space<vmem>>, %arg2: memref<16x64xf32, #tpu.memory_space<vmem>>, %arg3: memref<1x64xf32, #tpu.memory_space<vmem>>, %arg4: memref<64x128xf32, #tpu.memory_space<vmem>>, %arg5: memref<1x128xf32, #tpu.memory_space<vmem>>, %arg6: memref<64x16xf32, #tpu.memory_space<vmem>>, %arg7: memref<32x16xf32, #tpu.memory_space<vmem>>, %arg8: memref<32x16xf32, #tpu.memory_space<vmem>>) attributes {dimension_semantics = [#tpu.dimension_semantics<parallel>], iteration_bounds = array<i64: 1>, scalar_prefetch = 0 : i64, scratch_operands = 0 : i64, tpu.core_type = #tpu.core_type<tc>, window_params = [{transform_indices = @transform_0, window_bounds = array<i64: 32, 16>}, {pipeline_mode = #tpu.pipeline_mode<synchronous>, transform_indices = @transform_1, window_bounds = array<i64: 16, 64>}, {pipeline_mode = #tpu.pipeline_mode<synchronous>, transform_indices = @transform_2, window_bounds = array<i64: 1, 64>}, {pipeline_mode = #tpu.pipeline_mode<synchronous>, transform_indices = @transform_3, window_bounds = array<i64: 64, 128>}, {pipeline_mode = #tpu.pipeline_mode<synchronous>, transform_indices = @transform_4, window_bounds = array<i64: 1, 128>}, {pipeline_mode = #tpu.pipeline_mode<synchronous>, transform_indices = @transform_5, window_bounds = array<i64: 64, 16>}, {transform_indices = @transform_6, window_bounds = array<i64: 32, 16>}, {transform_indices = @transform_7, window_bounds = array<i64: 32, 16>}]} {
    %c0 = arith.constant 0 : index
    %c0_0 = arith.constant 0 : index
    %0 = vector.load %arg1[%c0, %c0_0] : memref<32x16xf32, #tpu.memory_space<vmem>>, vector<32x16xf32>
    %c0_1 = arith.constant 0 : index
    %c0_2 = arith.constant 0 : index
    %1 = vector.load %arg2[%c0_1, %c0_2] : memref<16x64xf32, #tpu.memory_space<vmem>>, vector<16x64xf32>
    %cst = arith.constant dense<0.000000e+00> : vector<32x64xf32>
    %2 = tpu.matmul %0, %1, %cst {dimension_numbers = #tpu.dot_dimension_numbers<[1], [0], [0], [1], [0, 0, 1, 1], [], []>} : vector<32x16xf32>, vector<16x64xf32>, vector<32x64xf32> -> vector<32x64xf32>
    %c0_3 = arith.constant 0 : index
    %c0_4 = arith.constant 0 : index
    %3 = vector.load %arg3[%c0_3, %c0_4] : memref<1x64xf32, #tpu.memory_space<vmem>>, vector<1x64xf32>
    %4 = vector.broadcast %3 : vector<1x64xf32> to vector<32x64xf32>
    %5 = arith.addf %2, %4 : vector<32x64xf32>
    %cst_5 = arith.constant 0.000000e+00 : f32
    %6 = vector.broadcast %cst_5 : f32 to vector<32x64xf32>
    %7 = arith.maximumf %5, %6 : vector<32x64xf32>
    %c0_6 = arith.constant 0 : index
    %c0_7 = arith.constant 0 : index
    %8 = vector.load %arg4[%c0_6, %c0_7] : memref<64x128xf32, #tpu.memory_space<vmem>>, vector<64x128xf32>
    %cst_8 = arith.constant dense<0.000000e+00> : vector<32x128xf32>
    %9 = tpu.matmul %7, %8, %cst_8 {dimension_numbers = #tpu.dot_dimension_numbers<[1], [0], [0], [1], [0, 0, 1, 1], [], []>} : vector<32x64xf32>, vector<64x128xf32>, vector<32x128xf32> -> vector<32x128xf32>
    %c0_9 = arith.constant 0 : index
    %c0_10 = arith.constant 0 : index
    %10 = vector.load %arg5[%c0_9, %c0_10] : memref<1x128xf32, #tpu.memory_space<vmem>>, vector<1x128xf32>
    %11 = vector.broadcast %10 : vector<1x128xf32> to vector<32x128xf32>
    %12 = arith.addf %9, %11 : vector<32x128xf32>
    %13 = arith.negf %12 : vector<32x128xf32>
    %14 = math.exp %13 : vector<32x128xf32>
    %cst_11 = arith.constant 1.000000e+00 : f32
    %15 = vector.broadcast %cst_11 : f32 to vector<32x128xf32>
    %16 = arith.addf %15, %14 : vector<32x128xf32>
    %17 = arith.divf %15, %16 : vector<32x128xf32>
    %c0_12 = arith.constant 0 : index
    %c0_13 = arith.constant 0 : index
    %18 = vector.load %arg6[%c0_12, %c0_13] : memref<64x16xf32, #tpu.memory_space<vmem>>, vector<64x16xf32>
    %19 = vector.extract_strided_slice %17 {offsets = [0, 0], sizes = [32, 64], strides = [1, 1]} : vector<32x128xf32> to vector<32x64xf32>
    %20 = arith.mulf %19, %7 : vector<32x64xf32>
    %cst_14 = arith.constant dense<0.000000e+00> : vector<32x16xf32>
    %21 = tpu.matmul %20, %18, %cst_14 {dimension_numbers = #tpu.dot_dimension_numbers<[1], [0], [0], [1], [0, 0, 1, 1], [], []>} : vector<32x64xf32>, vector<64x16xf32>, vector<32x16xf32> -> vector<32x16xf32>
    %c0_15 = arith.constant 0 : index
    %c0_16 = arith.constant 0 : index
    %22 = vector.load %arg7[%c0_15, %c0_16] : memref<32x16xf32, #tpu.memory_space<vmem>>, vector<32x16xf32>
    tpu.vector_store %arg7[%c0_15, %c0_16], %21 {strides = array<i32>} : memref<32x16xf32, #tpu.memory_space<vmem>>, vector<32x16xf32>,
    %23 = vector.extract_strided_slice %17 {offsets = [0, 64], sizes = [32, 64], strides = [1, 1]} : vector<32x128xf32> to vector<32x64xf32>
    %24 = arith.mulf %23, %7 : vector<32x64xf32>
    %cst_17 = arith.constant dense<0.000000e+00> : vector<32x16xf32>
    %25 = tpu.matmul %24, %18, %cst_17 {dimension_numbers = #tpu.dot_dimension_numbers<[1], [0], [0], [1], [0, 0, 1, 1], [], []>} : vector<32x64xf32>, vector<64x16xf32>, vector<32x16xf32> -> vector<32x16xf32>
    %c0_18 = arith.constant 0 : index
    %c0_19 = arith.constant 0 : index
    %26 = vector.load %arg8[%c0_18, %c0_19] : memref<32x16xf32, #tpu.memory_space<vmem>>, vector<32x16xf32>
    tpu.vector_store %arg8[%c0_18, %c0_19], %25 {strides = array<i32>} : memref<32x16xf32, #tpu.memory_space<vmem>>, vector<32x16xf32>,
    return
  }
  func.func @transform_0(%arg0: i32) -> (i32, i32) {
    %c0_i32 = arith.constant 0 : i32
    %c0_i32_0 = arith.constant 0 : i32
    return %arg0, %c0_i32 : i32, i32
  }
  func.func @transform_1(%arg0: i32) -> (i32, i32) {
    %c0_i32 = arith.constant 0 : i32
    %c0_i32_0 = arith.constant 0 : i32
    %c0_i32_1 = arith.constant 0 : i32
    return %c0_i32, %c0_i32_0 : i32, i32
  }
  func.func @transform_2(%arg0: i32) -> (i32, i32) {
    %c0_i32 = arith.constant 0 : i32
    %c0_i32_0 = arith.constant 0 : i32
    %c0_i32_1 = arith.constant 0 : i32
    return %c0_i32, %c0_i32_0 : i32, i32
  }
  func.func @transform_3(%arg0: i32) -> (i32, i32) {
    %c0_i32 = arith.constant 0 : i32
    %c0_i32_0 = arith.constant 0 : i32
    %c0_i32_1 = arith.constant 0 : i32
    return %c0_i32, %c0_i32_0 : i32, i32
  }
  func.func @transform_4(%arg0: i32) -> (i32, i32) {
    %c0_i32 = arith.constant 0 : i32
    %c0_i32_0 = arith.constant 0 : i32
    %c0_i32_1 = arith.constant 0 : i32
    return %c0_i32, %c0_i32_0 : i32, i32
  }
  func.func @transform_5(%arg0: i32) -> (i32, i32) {
    %c0_i32 = arith.constant 0 : i32
    %c0_i32_0 = arith.constant 0 : i32
    %c0_i32_1 = arith.constant 0 : i32
    return %c0_i32, %c0_i32_0 : i32, i32
  }
  func.func @transform_6(%arg0: i32) -> (i32, i32) {
    %c0_i32 = arith.constant 0 : i32
    %c0_i32_0 = arith.constant 0 : i32
    return %arg0, %c0_i32 : i32, i32
  }
  func.func @transform_7(%arg0: i32) -> (i32, i32) {
    %c0_i32 = arith.constant 0 : i32
    %c0_i32_0 = arith.constant 0 : i32
    return %arg0, %c0_i32 : i32, i32
  }
}

</mosaic_0001>

<llo_original>
// kernel: model_forward.1
$region0: #{model_forward.1}
  #allocation0 [shape = 'u32[]', space=smem, size = 0x4, offset = 0x4, fixed_abs, tag = 'smem constant byte address 0x4 - core index']
  #allocation1 [shape = 'u32[144,128]{1,0:T(1,128)}', space=vmem, size = 0x12000, scoped, tag = 'internal scratch']
  %s0 = inlined_call_operand.vmem [shape: f32[32,16], index: 0, kind: input, shape index: {}]
  %s1 = inlined_call_operand.vmem [shape: f32[16,64], index: 1, kind: input, shape index: {}]
  %s2 = inlined_call_operand.vmem [shape: f32[1,64], index: 2, kind: input, shape index: {}]
  %s3 = inlined_call_operand.vmem [shape: f32[64,128], index: 3, kind: input, shape index: {}]
  %s4 = inlined_call_operand.vmem [shape: f32[1,128], index: 4, kind: input, shape index: {}]
  %s5 = inlined_call_operand.vmem [shape: f32[64,16], index: 5, kind: input, shape index: {}]
  %s6 = inlined_call_operand.vmem [shape: f32[32,16], index: 6, kind: output, shape index: {0}]
  %s7 = inlined_call_operand.vmem [shape: f32[32,16], index: 7, kind: output, shape index: {1}]
  %8 = xla_tuple %s6, %s7
  %s9 = sld [smem:[#allocation0]]
  $region42: #{model_forward.1} parent=0
    _
  %s11 = ssub.s32 1, %s9
  %s12 = scalar_select 0, %s11, %s9
  // Predicated region
  $region2: #{model_forward.1} parent=0 // pred_check
    _
  $region3: #{model_forward.1} parent=0 // pred_check_branch
    %14 = sbr.rel (0) target = $region5
  $region4: #{model_forward.1} parent=0 // pred_region
    _
  $region5: #{model_forward.1} parent=0 // pred_fallthru
    _
  // Predicated region
  $region6: #{model_forward.1} parent=0 // pred_check
    _
  $region7: #{model_forward.1} parent=0 // pred_check_branch
    %16 = sbr.rel (0) target = $region9
  $region8: #{model_forward.1} parent=0 // pred_region
    _
  $region9: #{model_forward.1} parent=0 // pred_fallthru
    _
  // Predicated region
  $region10: #{model_forward.1} parent=0 // pred_check
    _
  $region11: #{model_forward.1} parent=0 // pred_check_branch
    %18 = sbr.rel (0) target = $region13
  $region12: #{model_forward.1} parent=0 // pred_region
    _
  $region13: #{model_forward.1} parent=0 // pred_fallthru
    _
  // Predicated region
  $region14: #{model_forward.1} parent=0 // pred_check
    _
  $region15: #{model_forward.1} parent=0 // pred_check_branch
    %20 = sbr.rel (0) target = $region17
  $region16: #{model_forward.1} parent=0 // pred_region
    _
  $region17: #{model_forward.1} parent=0 // pred_fallthru
    _
  // Predicated region
  $region18: #{model_forward.1} parent=0 // pred_check
    _
  $region19: #{model_forward.1} parent=0 // pred_check_branch
    %22 = sbr.rel (0) target = $region21
  $region20: #{model_forward.1} parent=0 // pred_region
    _
  $region21: #{model_forward.1} parent=0 // pred_fallthru
    _
  // Predicated region
  $region22: #{model_forward.1} parent=0 // pred_check
    _
  $region23: #{model_forward.1} parent=0 // pred_check_branch
    %24 = sbr.rel (0) target = $region25
  $region24: #{model_forward.1} parent=0 // pred_region
    _
  $region25: #{model_forward.1} parent=0 // pred_fallthru
    _
  %v25 = vld [vmem:[%s0] sm:$0xff]
  %v26 = vld [vmem:[%s0 + $0x8] sm:$0xff]
  %v27 = vld [vmem:[%s0 + $0x10] sm:$0xff]
  %v28 = vld [vmem:[%s0 + $0x18] sm:$0xff]
  %v29 = vld [vmem:[%s1] sm:$0xff]
  %v30 = vld [vmem:[%s1 + $0x8] sm:$0xff]
  %v31 = vld [vmem:[%s2] sm:$0x1]
  %v33 = vlaneseq
  %v34 = vshrl.u32 %v33, 7
  %v35 = vsub.s32 0, %v34
  %v36 = vrot.slane %v31, %v35
  %vm38 = vcmask 130048
  %v40 = vsel %vm38, %v25, 0
  %v43 = vsel %vm38, %v26, 0
  %v46 = vsel %vm38, %v27, 0
  %v49 = vsel %vm38, %v28, 0
  %51 = vmatprep.subr.mxu0 0.0
  %52 = vmatpush1.msra.mxu0 0.0
  %53 = vmatprep.subr.mxu0 0.0
  %54 = vmatpush1.msra.mxu0 0.0
  %55 = vmatprep.subr.mxu0 0.0
  %56 = vmatpush1.msra.mxu0 0.0
  %57 = vmatprep.subr.mxu0 0.0
  %58 = vmatpush1.msra.mxu0 0.0
  %59 = vmatprep.subr.mxu0 0.0
  %60 = vmatpush1.msra.mxu0 0.0
  %61 = vmatprep.subr.mxu0 0.0
  %62 = vmatpush1.msra.mxu0 0.0
  %63 = vmatprep.subr.mxu0 0.0
  %64 = vmatpush1.msra.mxu0 0.0
  %65 = vmatprep.subr.mxu0 0.0
  %66 = vmatpush1.msra.mxu0 0.0
  %67 = vmatprep.subr.mxu0 0.0
  %68 = vmatpush1.msra.mxu0 0.0
  %69 = vmatprep.subr.mxu0 0.0
  %70 = vmatpush1.msra.mxu0 0.0
  %71 = vmatprep.subr.mxu0 0.0
  %72 = vmatpush1.msra.mxu0 0.0
  %73 = vmatprep.subr.mxu0 0.0
  %74 = vmatpush1.msra.mxu0 0.0
  %75 = vmatprep.subr.mxu0 0.0
  %76 = vmatpush1.msra.mxu0 0.0
  %77 = vmatprep.subr.mxu0 0.0
  %78 = vmatpush1.msra.mxu0 0.0
  %79 = vmatprep.subr.mxu0 0.0
  %80 = vmatpush1.msra.mxu0 %v30
  %81 = vmatprep.subr.mxu0 0.0
  %82 = vmatpush1.msra.mxu0 %v29
  %83 = vmatprep.subr.mxu0 0.0
  %84 = vmatpush2.msra.mxu0 0.0
  %85 = vmatprep.subr.mxu0 0.0
  %86 = vmatpush2.msra.mxu0 0.0
  %87 = vmatprep.subr.mxu0 0.0
  %88 = vmatpush2.msra.mxu0 0.0
  %89 = vmatprep.subr.mxu0 0.0
  %90 = vmatpush2.msra.mxu0 0.0
  %91 = vmatprep.subr.mxu0 0.0
  %92 = vmatpush2.msra.mxu0 0.0
  %93 = vmatprep.subr.mxu0 0.0
  %94 = vmatpush2.msra.mxu0 0.0
  %95 = vmatprep.subr.mxu0 0.0
  %96 = vmatpush2.msra.mxu0 0.0
  %97 = vmatprep.subr.mxu0 0.0
  %98 = vmatpush2.msra.mxu0 0.0
  %99 = vmatprep.subr.mxu0 0.0
  %100 = vmatpush2.msra.mxu0 0.0
  %101 = vmatprep.subr.mxu0 0.0
  %102 = vmatpush2.msra.mxu0 0.0
  %103 = vmatprep.subr.mxu0 0.0
  %104 = vmatpush2.msra.mxu0 0.0
  %105 = vmatprep.subr.mxu0 0.0
  %106 = vmatpush2.msra.mxu0 0.0
  %107 = vmatprep.subr.mxu0 0.0
  %108 = vmatpush2.msra.mxu0 0.0
  %109 = vmatprep.subr.mxu0 0.0
  %110 = vmatpush2.msra.mxu0 0.0
  %111 = vmatprep.subr.mxu0 0.0
  %112 = vmatpush2.msra.mxu0 0.0
  %113 = vmatprep.subr.mxu0 0.0
  %114 = vmatpush2.msra.mxu0 0.0
  %115 = vmatprep.mubr.f32.mxu0 0.0
  %116 = vmatmul.mubr.f32.gmra.mxu0 %v40
  %v117 = vpop.f32.mrf.mxu0
  %v118 = vadd.f32 %v36, %v117
  %v119 = vpop.f32.mrf.mxu0
  %120 = vmatprep.mubr.f32.mxu0 0.0
  %121 = vmatmul.mubr.f32.gmra.mxu0 %v43
  %v122 = vpop.f32.mrf.mxu0
  %v123 = vadd.f32 %v36, %v122
  %v124 = vpop.f32.mrf.mxu0
  %125 = vmatprep.mubr.f32.mxu0 0.0
  %126 = vmatmul.mubr.f32.gmra.mxu0 %v46
  %v127 = vpop.f32.mrf.mxu0
  %v128 = vadd.f32 %v36, %v127
  %v129 = vpop.f32.mrf.mxu0
  %130 = vmatprep.mubr.f32.mxu0 0.0
  %131 = vmatmul.mubr.f32.gmra.mxu0 %v49
  %v132 = vpop.f32.mrf.mxu0
  %v133 = vadd.f32 %v36, %v132
  %v134 = vpop.f32.mrf.mxu0
  %135 = vdwg.mxu0
  %v136 = vmax.f32 %v118, 0.0
  %v137 = vmax.f32 %v123, 0.0
  %v138 = vmax.f32 %v128, 0.0
  %v139 = vmax.f32 %v133, 0.0
  %v140 = vld [vmem:[%s3] sm:$0xff]
  %v141 = vld [vmem:[%s3 + $0x8] sm:$0xff]
  %v142 = vld [vmem:[%s3 + $0x10] sm:$0xff]
  %v143 = vld [vmem:[%s3 + $0x18] sm:$0xff]
  %v144 = vld [vmem:[%s3 + $0x20] sm:$0xff]
  %v145 = vld [vmem:[%s3 + $0x28] sm:$0xff]
  %v146 = vld [vmem:[%s3 + $0x30] sm:$0xff]
  %v147 = vld [vmem:[%s3 + $0x38] sm:$0xff]
  %v148 = vld [vmem:[%s4] sm:$0x1]
  %v150 = vlaneseq
  %v151 = vshrl.u32 %v150, 7
  %v152 = vsub.s32 0, %v151
  %v153 = vrot.slane %v148, %v152
  %vm155 = vcmask 523264
  %v157 = vsel %vm155, %v136, 0
  %v160 = vsel %vm155, %v137, 0
  %v163 = vsel %vm155, %v138, 0
  %v166 = vsel %vm155, %v139, 0
  %168 = vmatprep.subr.mxu0 0.0
  %169 = vmatpush1.msra.mxu0 0.0
  %170 = vmatprep.subr.mxu0 0.0
  %171 = vmatpush1.msra.mxu0 0.0
  %172 = vmatprep.subr.mxu0 0.0
  %173 = vmatpush1.msra.mxu0 0.0
  %174 = vmatprep.subr.mxu0 0.0
  %175 = vmatpush1.msra.mxu0 0.0
  %176 = vmatprep.subr.mxu0 0.0
  %177 = vmatpush1.msra.mxu0 0.0
  %178 = vmatprep.subr.mxu0 0.0
  %179 = vmatpush1.msra.mxu0 0.0
  %180 = vmatprep.subr.mxu0 0.0
  %181 = vmatpush1.msra.mxu0 0.0
  %182 = vmatprep.subr.mxu0 0.0
  %183 = vmatpush1.msra.mxu0 0.0
  %184 = vmatprep.subr.mxu0 0.0
  %185 = vmatpush1.msra.mxu0 %v147
  %186 = vmatprep.subr.mxu0 0.0
  %187 = vmatpush1.msra.mxu0 %v146
  %188 = vmatprep.subr.mxu0 0.0
  %189 = vmatpush1.msra.mxu0 %v145
  %190 = vmatprep.subr.mxu0 0.0
  %191 = vmatpush1.msra.mxu0 %v144
  %192 = vmatprep.subr.mxu0 0.0
  %193 = vmatpush1.msra.mxu0 %v143
  %194 = vmatprep.subr.mxu0 0.0
  %195 = vmatpush1.msra.mxu0 %v142
  %196 = vmatprep.subr.mxu0 0.0
  %197 = vmatpush1.msra.mxu0 %v141
  %198 = vmatprep.subr.mxu0 0.0
  %199 = vmatpush1.msra.mxu0 %v140
  %200 = vmatprep.subr.mxu0 0.0
  %201 = vmatpush2.msra.mxu0 0.0
  %202 = vmatprep.subr.mxu0 0.0
  %203 = vmatpush2.msra.mxu0 0.0
  %204 = vmatprep.subr.mxu0 0.0
  %205 = vmatpush2.msra.mxu0 0.0
  %206 = vmatprep.subr.mxu0 0.0
  %207 = vmatpush2.msra.mxu0 0.0
  %208 = vmatprep.subr.mxu0 0.0
  %209 = vmatpush2.msra.mxu0 0.0
  %210 = vmatprep.subr.mxu0 0.0
  %211 = vmatpush2.msra.mxu0 0.0
  %212 = vmatprep.subr.mxu0 0.0
  %213 = vmatpush2.msra.mxu0 0.0
  %214 = vmatprep.subr.mxu0 0.0
  %215 = vmatpush2.msra.mxu0 0.0
  %216 = vmatprep.subr.mxu0 0.0
  %217 = vmatpush2.msra.mxu0 0.0
  %218 = vmatprep.subr.mxu0 0.0
  %219 = vmatpush2.msra.mxu0 0.0
  %220 = vmatprep.subr.mxu0 0.0
  %221 = vmatpush2.msra.mxu0 0.0
  %222 = vmatprep.subr.mxu0 0.0
  %223 = vmatpush2.msra.mxu0 0.0
  %224 = vmatprep.subr.mxu0 0.0
  %225 = vmatpush2.msra.mxu0 0.0
  %226 = vmatprep.subr.mxu0 0.0
  %227 = vmatpush2.msra.mxu0 0.0
  %228 = vmatprep.subr.mxu0 0.0
  %229 = vmatpush2.msra.mxu0 0.0
  %230 = vmatprep.subr.mxu0 0.0
  %231 = vmatpush2.msra.mxu0 0.0
  %232 = vmatprep.mubr.f32.mxu0 0.0
  %233 = vmatmul.mubr.f32.gmra.mxu0 %v157
  %v234 = vpop.f32.mrf.mxu0
  %v235 = vadd.f32 %v153, %v234
  %v236 = vpop.f32.mrf.mxu0
  %237 = vmatprep.mubr.f32.mxu0 0.0
  %238 = vmatmul.mubr.f32.gmra.mxu0 %v160
  %v239 = vpop.f32.mrf.mxu0
  %v240 = vadd.f32 %v153, %v239
  %v241 = vpop.f32.mrf.mxu0
  %242 = vmatprep.mubr.f32.mxu0 0.0
  %243 = vmatmul.mubr.f32.gmra.mxu0 %v163
  %v244 = vpop.f32.mrf.mxu0
  %v245 = vadd.f32 %v153, %v244
  %v246 = vpop.f32.mrf.mxu0
  %247 = vmatprep.mubr.f32.mxu0 0.0
  %248 = vmatmul.mubr.f32.gmra.mxu0 %v166
  %v249 = vpop.f32.mrf.mxu0
  %v250 = vadd.f32 %v153, %v249
  %v251 = vpop.f32.mrf.mxu0
  %252 = vdwg.mxu0
  %v253 = vxor.u32 %v235, 2147483648
  %v254 = vxor.u32 %v240, 2147483648
  %v255 = vxor.u32 %v245, 2147483648
  %v256 = vxor.u32 %v250, 2147483648
  %v257 = vmul.f32 %v253, 1.442695
  %v258 = vpow.pop %v257
  %v259 = vmul.f32 %v254, 1.442695
  %v260 = vpow.pop %v259
  %v261 = vmul.f32 %v255, 1.442695
  %v262 = vpow.pop %v261
  %v263 = vmul.f32 %v256, 1.442695
  %v264 = vpow.pop %v263
  %v265 = vadd.f32 %v258, 1.0
  %v266 = vadd.f32 %v260, 1.0
  %v267 = vadd.f32 %v262, 1.0
  %v268 = vadd.f32 %v264, 1.0
  %v269 = vrcp.pop %v265
  %v270 = vmul.f32 1.0, %v269
  %v271 = vrcp.pop %v266
  %v272 = vmul.f32 1.0, %v271
  %v273 = vrcp.pop %v267
  %v274 = vmul.f32 1.0, %v273
  %v275 = vrcp.pop %v268
  %v276 = vmul.f32 1.0, %v275
  %v277 = vld [vmem:[%s5] sm:$0xff]
  %v278 = vld [vmem:[%s5 + $0x8] sm:$0xff]
  %v279 = vld [vmem:[%s5 + $0x10] sm:$0xff]
  %v280 = vld [vmem:[%s5 + $0x18] sm:$0xff]
  %v281 = vld [vmem:[%s5 + $0x20] sm:$0xff]
  %v282 = vld [vmem:[%s5 + $0x28] sm:$0xff]
  %v283 = vld [vmem:[%s5 + $0x30] sm:$0xff]
  %v284 = vld [vmem:[%s5 + $0x38] sm:$0xff]
  %v285 = vmul.f32 %v270, %v136
  %v286 = vmul.f32 %v272, %v137
  %v287 = vmul.f32 %v274, %v138
  %v288 = vmul.f32 %v276, %v139
  %v290 = vsel %vm155, %v285, 0
  %v293 = vsel %vm155, %v286, 0
  %v296 = vsel %vm155, %v287, 0
  %v299 = vsel %vm155, %v288, 0
  %301 = vmatprep.subr.mxu0 0.0
  %302 = vmatpush1.msra.mxu0 0.0
  %303 = vmatprep.subr.mxu0 0.0
  %304 = vmatpush1.msra.mxu0 0.0
  %305 = vmatprep.subr.mxu0 0.0
  %306 = vmatpush1.msra.mxu0 0.0
  %307 = vmatprep.subr.mxu0 0.0
  %308 = vmatpush1.msra.mxu0 0.0
  %309 = vmatprep.subr.mxu0 0.0
  %310 = vmatpush1.msra.mxu0 0.0
  %311 = vmatprep.subr.mxu0 0.0
  %312 = vmatpush1.msra.mxu0 0.0
  %313 = vmatprep.subr.mxu0 0.0
  %314 = vmatpush1.msra.mxu0 0.0
  %315 = vmatprep.subr.mxu0 0.0
  %316 = vmatpush1.msra.mxu0 0.0
  %317 = vmatprep.subr.mxu0 0.0
  %318 = vmatpush1.msra.mxu0 %v284
  %319 = vmatprep.subr.mxu0 0.0
  %320 = vmatpush1.msra.mxu0 %v283
  %321 = vmatprep.subr.mxu0 0.0
  %322 = vmatpush1.msra.mxu0 %v282
  %323 = vmatprep.subr.mxu0 0.0
  %324 = vmatpush1.msra.mxu0 %v281
  %325 = vmatprep.subr.mxu0 0.0
  %326 = vmatpush1.msra.mxu0 %v280
  %327 = vmatprep.subr.mxu0 0.0
  %328 = vmatpush1.msra.mxu0 %v279
  %329 = vmatprep.subr.mxu0 0.0
  %330 = vmatpush1.msra.mxu0 %v278
  %331 = vmatprep.subr.mxu0 0.0
  %332 = vmatpush1.msra.mxu0 %v277
  %333 = vmatprep.subr.mxu0 0.0
  %334 = vmatpush2.msra.mxu0 0.0
  %335 = vmatprep.subr.mxu0 0.0
  %336 = vmatpush2.msra.mxu0 0.0
  %337 = vmatprep.subr.mxu0 0.0
  %338 = vmatpush2.msra.mxu0 0.0
  %339 = vmatprep.subr.mxu0 0.0
  %340 = vmatpush2.msra.mxu0 0.0
  %341 = vmatprep.subr.mxu0 0.0
  %342 = vmatpush2.msra.mxu0 0.0
  %343 = vmatprep.subr.mxu0 0.0
  %344 = vmatpush2.msra.mxu0 0.0
  %345 = vmatprep.subr.mxu0 0.0
  %346 = vmatpush2.msra.mxu0 0.0
  %347 = vmatprep.subr.mxu0 0.0
  %348 = vmatpush2.msra.mxu0 0.0
  %349 = vmatprep.subr.mxu0 0.0
  %350 = vmatpush2.msra.mxu0 0.0
  %351 = vmatprep.subr.mxu0 0.0
  %352 = vmatpush2.msra.mxu0 0.0
  %353 = vmatprep.subr.mxu0 0.0
  %354 = vmatpush2.msra.mxu0 0.0
  %355 = vmatprep.subr.mxu0 0.0
  %356 = vmatpush2.msra.mxu0 0.0
  %357 = vmatprep.subr.mxu0 0.0
  %358 = vmatpush2.msra.mxu0 0.0
  %359 = vmatprep.subr.mxu0 0.0
  %360 = vmatpush2.msra.mxu0 0.0
  %361 = vmatprep.subr.mxu0 0.0
  %362 = vmatpush2.msra.mxu0 0.0
  %363 = vmatprep.subr.mxu0 0.0
  %364 = vmatpush2.msra.mxu0 0.0
  %365 = vmatprep.mubr.f32.mxu0 0.0
  %366 = vmatmul.mubr.f32.gmra.mxu0 %v290
  %v367 = vpop.f32.mrf.mxu0
  %v368 = vadd.f32 0.0, %v367
  %v369 = vpop.f32.mrf.mxu0
  %370 = vmatprep.mubr.f32.mxu0 0.0
  %371 = vmatmul.mubr.f32.gmra.mxu0 %v293
  %v372 = vpop.f32.mrf.mxu0
  %v373 = vadd.f32 0.0, %v372
  %v374 = vpop.f32.mrf.mxu0
  %375 = vmatprep.mubr.f32.mxu0 0.0
  %376 = vmatmul.mubr.f32.gmra.mxu0 %v296
  %v377 = vpop.f32.mrf.mxu0
  %v378 = vadd.f32 0.0, %v377
  %v379 = vpop.f32.mrf.mxu0
  %380 = vmatprep.mubr.f32.mxu0 0.0
  %381 = vmatmul.mubr.f32.gmra.mxu0 %v299
  %v382 = vpop.f32.mrf.mxu0
  %v383 = vadd.f32 0.0, %v382
  %v384 = vpop.f32.mrf.mxu0
  %385 = vdwg.mxu0
  %386 = vst.msk [vmem:[%s6] sm:$0xff] %vm38, %v368
  %387 = vst.msk [vmem:[%s6 + $0x8] sm:$0xff] %vm38, %v373
  %388 = vst.msk [vmem:[%s6 + $0x10] sm:$0xff] %vm38, %v378
  %389 = vst.msk [vmem:[%s6 + $0x18] sm:$0xff] %vm38, %v383
  %390 = vrot.lane.b32.xlu0 %v136, 64
  %v391 = vpop.permute.xlu0 %390
  %392 = vrot.lane.b32.xlu0 %v137, 64
  %v393 = vpop.permute.xlu0 %392
  %394 = vrot.lane.b32.xlu0 %v138, 64
  %v395 = vpop.permute.xlu0 %394
  %396 = vrot.lane.b32.xlu0 %v139, 64
  %v397 = vpop.permute.xlu0 %396
  %v402 = vmul.f32 %v270, %v391
  %v403 = vmul.f32 %v272, %v393
  %v404 = vmul.f32 %v274, %v395
  %v405 = vmul.f32 %v276, %v397
  %410 = vrot.lane.b32.xlu0 %v402, 64
  %v411 = vpop.permute.xlu0 %410
  %412 = vrot.lane.b32.xlu0 %v403, 64
  %v413 = vpop.permute.xlu0 %412
  %414 = vrot.lane.b32.xlu0 %v404, 64
  %v415 = vpop.permute.xlu0 %414
  %416 = vrot.lane.b32.xlu0 %v405, 64
  %v417 = vpop.permute.xlu0 %416
  %v418 = vsel %vm155, %v411, 0
  %v420 = vsel %vm155, %v413, 0
  %v422 = vsel %vm155, %v415, 0
  %v424 = vsel %vm155, %v417, 0
  %426 = vmatprep.subr.mxu0 0.0
  %427 = vmatpush1.msra.mxu0 0.0
  %428 = vmatprep.subr.mxu0 0.0
  %429 = vmatpush1.msra.mxu0 0.0
  %430 = vmatprep.subr.mxu0 0.0
  %431 = vmatpush1.msra.mxu0 0.0
  %432 = vmatprep.subr.mxu0 0.0
  %433 = vmatpush1.msra.mxu0 0.0
  %434 = vmatprep.subr.mxu0 0.0
  %435 = vmatpush1.msra.mxu0 0.0
  %436 = vmatprep.subr.mxu0 0.0
  %437 = vmatpush1.msra.mxu0 0.0
  %438 = vmatprep.subr.mxu0 0.0
  %439 = vmatpush1.msra.mxu0 0.0
  %440 = vmatprep.subr.mxu0 0.0
  %441 = vmatpush1.msra.mxu0 0.0
  %442 = vmatprep.subr.mxu0 0.0
  %443 = vmatpush1.msra.mxu0 %v284
  %444 = vmatprep.subr.mxu0 0.0
  %445 = vmatpush1.msra.mxu0 %v283
  %446 = vmatprep.subr.mxu0 0.0
  %447 = vmatpush1.msra.mxu0 %v282
  %448 = vmatprep.subr.mxu0 0.0
  %449 = vmatpush1.msra.mxu0 %v281
  %450 = vmatprep.subr.mxu0 0.0
  %451 = vmatpush1.msra.mxu0 %v280
  %452 = vmatprep.subr.mxu0 0.0
  %453 = vmatpush1.msra.mxu0 %v279
  %454 = vmatprep.subr.mxu0 0.0
  %455 = vmatpush1.msra.mxu0 %v278
  %456 = vmatprep.subr.mxu0 0.0
  %457 = vmatpush1.msra.mxu0 %v277
  %458 = vmatprep.subr.mxu0 0.0
  %459 = vmatpush2.msra.mxu0 0.0
  %460 = vmatprep.subr.mxu0 0.0
  %461 = vmatpush2.msra.mxu0 0.0
  %462 = vmatprep.subr.mxu0 0.0
  %463 = vmatpush2.msra.mxu0 0.0
  %464 = vmatprep.subr.mxu0 0.0
  %465 = vmatpush2.msra.mxu0 0.0
  %466 = vmatprep.subr.mxu0 0.0
  %467 = vmatpush2.msra.mxu0 0.0
  %468 = vmatprep.subr.mxu0 0.0
  %469 = vmatpush2.msra.mxu0 0.0
  %470 = vmatprep.subr.mxu0 0.0
  %471 = vmatpush2.msra.mxu0 0.0
  %472 = vmatprep.subr.mxu0 0.0
  %473 = vmatpush2.msra.mxu0 0.0
  %474 = vmatprep.subr.mxu0 0.0
  %475 = vmatpush2.msra.mxu0 0.0
  %476 = vmatprep.subr.mxu0 0.0
  %477 = vmatpush2.msra.mxu0 0.0
  %478 = vmatprep.subr.mxu0 0.0
  %479 = vmatpush2.msra.mxu0 0.0
  %480 = vmatprep.subr.mxu0 0.0
  %481 = vmatpush2.msra.mxu0 0.0
  %482 = vmatprep.subr.mxu0 0.0
  %483 = vmatpush2.msra.mxu0 0.0
  %484 = vmatprep.subr.mxu0 0.0
  %485 = vmatpush2.msra.mxu0 0.0
  %486 = vmatprep.subr.mxu0 0.0
  %487 = vmatpush2.msra.mxu0 0.0
  %488 = vmatprep.subr.mxu0 0.0
  %489 = vmatpush2.msra.mxu0 0.0
  %490 = vmatprep.mubr.f32.mxu0 0.0
  %491 = vmatmul.mubr.f32.gmra.mxu0 %v418
  %v492 = vpop.f32.mrf.mxu0
  %v493 = vadd.f32 0.0, %v492
  %v494 = vpop.f32.mrf.mxu0
  %495 = vmatprep.mubr.f32.mxu0 0.0
  %496 = vmatmul.mubr.f32.gmra.mxu0 %v420
  %v497 = vpop.f32.mrf.mxu0
  %v498 = vadd.f32 0.0, %v497
  %v499 = vpop.f32.mrf.mxu0
  %500 = vmatprep.mubr.f32.mxu0 0.0
  %501 = vmatmul.mubr.f32.gmra.mxu0 %v422
  %v502 = vpop.f32.mrf.mxu0
  %v503 = vadd.f32 0.0, %v502
  %v504 = vpop.f32.mrf.mxu0
  %505 = vmatprep.mubr.f32.mxu0 0.0
  %506 = vmatmul.mubr.f32.gmra.mxu0 %v424
  %v507 = vpop.f32.mrf.mxu0
  %v508 = vadd.f32 0.0, %v507
  %v509 = vpop.f32.mrf.mxu0
  %510 = vdwg.mxu0
  %511 = vst.msk [vmem:[%s7] sm:$0xff] %vm38, %v493
  %512 = vst.msk [vmem:[%s7 + $0x8] sm:$0xff] %vm38, %v498
  %513 = vst.msk [vmem:[%s7 + $0x10] sm:$0xff] %vm38, %v503
  %514 = vst.msk [vmem:[%s7 + $0x18] sm:$0xff] %vm38, %v508
  // Predicated region
  $region26: #{model_forward.1} parent=0 // pred_check
    _
  $region27: #{model_forward.1} parent=0 // pred_check_branch
    %516 = sbr.rel (0) target = $region29
  $region28: #{model_forward.1} parent=0 // pred_region
    _
  $region29: #{model_forward.1} parent=0 // pred_fallthru
    _
  // Predicated region
  $region30: #{model_forward.1} parent=0 // pred_check
    _
  $region31: #{model_forward.1} parent=0 // pred_check_branch
    %518 = sbr.rel (0) target = $region33
  $region32: #{model_forward.1} parent=0 // pred_region
    _
  $region33: #{model_forward.1} parent=0 // pred_fallthru
    _
  // Predicated region
  $region34: #{model_forward.1} parent=0 // pred_check
    _
  $region35: #{model_forward.1} parent=0 // pred_check_branch
    %520 = sbr.rel (0) target = $region37
  $region36: #{model_forward.1} parent=0 // pred_region
    _
  $region37: #{model_forward.1} parent=0 // pred_fallthru
    _
  // Predicated region
  $region38: #{model_forward.1} parent=0 // pred_check
    _
  $region39: #{model_forward.1} parent=0 // pred_check_branch
    %522 = sbr.rel (0) target = $region41
  $region40: #{model_forward.1} parent=0 // pred_region
    _
  $region41: #{model_forward.1} parent=0 // pred_fallthru
    _

</llo_original>
